<compile_context>
chip_gen: v6e
topology: v6e:2x2x1
jax: 0.10.0
libtpu: 0.0.40
codegen_flags: <defaults>
</compile_context>

<pallas_src>
import jax
import jax.numpy as jnp
from jax.experimental import pallas as pl
from jax.experimental.pallas import tpu as pltpu


# ---------------------------------------------------------------------------
# Kernel builders (support an arbitrary number of MLP layers)
# ---------------------------------------------------------------------------
def _make_experts_kernel(n_layers):
    def kernel(idx_ref, x_ref, *refs):
        del idx_ref  # used only by the index_maps (scalar prefetch)
        out_ref = refs[-1]
        h = x_ref[0]                                   # [B, Din]
        for l in range(n_layers):                      # static unroll
            w = refs[2 * l][0]                         # [d_in, d_out]
            b = refs[2 * l + 1][0]                     # [1, d_out]
            h = jnp.maximum(
                jnp.dot(h, w, preferred_element_type=jnp.float32) + b, 0.0)
        out_ref[0] = h.astype(out_ref.dtype)
    return kernel


def _make_gate_kernel(n_layers):
    def kernel(xi_ref, xl_ref, *refs):
        wf_ref, agg_ref, experts_ref, out_ref, gates_ref = refs[2 * n_layers:]

        # fold x[i] + x[-1] into the kernel (no extra HBM tensor per head)
        h = xi_ref[0] + xl_ref[0]                      # [B, Din]
        for l in range(n_layers):
            w = refs[2 * l][0]
            b = refs[2 * l + 1][0]
            h = jnp.maximum(
                jnp.dot(h, w, preferred_element_type=jnp.float32) + b, 0.0)

        # bias-free final projection to expert logits, then softmax
        logits = jnp.dot(h, wf_ref[0], preferred_element_type=jnp.float32)  # [B, E]
        logits = logits - jnp.max(logits, axis=-1, keepdims=True)
        ex = jnp.exp(logits)
        p = ex / jnp.sum(ex, axis=-1, keepdims=True)   # [B, E]

        # weighted expert mixture: unrolled FMA loop over E (VPU adds) instead
        # of a cross-sublane reduce over a [B, E, D] tile.
        eo = experts_ref[...]                          # [E, B, D]
        acc = p[:, 0:1] * eo[0]
        for e in range(1, eo.shape[0]):
            acc = acc + p[:, e:e + 1] * eo[e]
        out_ref[0] = acc.astype(out_ref.dtype)

        # in-kernel return_gate aggregation: probs @ agg_mat -> mean over batch
        per_b = jnp.dot(p, agg_ref[...], preferred_element_type=jnp.float32)  # [B, T+1]
        gates_ref[0] = jnp.mean(per_b, axis=0, keepdims=True)                 # [1, T+1]
    return kernel


# ---------------------------------------------------------------------------
# pallas_call wrappers
# ---------------------------------------------------------------------------
def fused_experts(x_stack, expert_x_idx, expert_w, expert_b):
    """x_stack [T+1,B,Din]; expert_w[l] [E,d_l,d_{l+1}]; expert_b[l] [E,1,d_{l+1}].
    Returns the expert output slab [E, B, D_out]."""
    n_layers = len(expert_w)
    E = expert_w[0].shape[0]
    _, B, Din = x_stack.shape
    Dout = expert_w[-1].shape[-1]

    in_specs = [pl.BlockSpec((1, B, Din), lambda e, idx: (idx[e], 0, 0))]
    weight_ops = []
    for l in range(n_layers):
        din, dout = expert_w[l].shape[1], expert_w[l].shape[2]
        in_specs.append(pl.BlockSpec((1, din, dout), lambda e, idx: (e, 0, 0)))
        in_specs.append(pl.BlockSpec((1, 1, dout), lambda e, idx: (e, 0, 0)))
        weight_ops += [expert_w[l], expert_b[l]]

    return pl.pallas_call(
        _make_experts_kernel(n_layers),
        out_shape=jax.ShapeDtypeStruct((E, B, Dout), jnp.float32),
        grid_spec=pltpu.PrefetchScalarGridSpec(
            num_scalar_prefetch=1,
            grid=(E,),
            in_specs=in_specs,
            out_specs=pl.BlockSpec((1, B, Dout), lambda e, idx: (e, 0, 0)),
        ),
        compiler_params=pltpu.CompilerParams(dimension_semantics=("parallel",)),
    )(expert_x_idx, x_stack, *weight_ops)


def fused_gates(x_stack, gate_w, gate_b, gate_final, agg_mat, expert_slab):
    """x_stack [T+1,B,Din]; gate_final [T+1,G_last,E]; agg_mat [E,T+1];
    expert_slab [E,B,D].  Returns (stem_out [T+1,B,D], gate_agg [T+1,1,T+1])."""
    n_layers = len(gate_w)
    H, B, Din = x_stack.shape                 # H = num_tasks + 1 heads
    E, _, D = expert_slab.shape
    last = H - 1

    in_specs = [
        pl.BlockSpec((1, B, Din), lambda i: (i, 0, 0)),      # x[i]
        pl.BlockSpec((1, B, Din), lambda i: (last, 0, 0)),   # x[-1]
    ]
    ops = [x_stack, x_stack]
    for l in range(n_layers):
        din, dout = gate_w[l].shape[1], gate_w[l].shape[2]
        in_specs.append(pl.BlockSpec((1, din, dout), lambda i: (i, 0, 0)))
        in_specs.append(pl.BlockSpec((1, 1, dout), lambda i: (i, 0, 0)))
        ops += [gate_w[l], gate_b[l]]
    in_specs.append(pl.BlockSpec((1, gate_final.shape[1], E), lambda i: (i, 0, 0)))
    in_specs.append(pl.BlockSpec((E, H), lambda i: (0, 0)))
    in_specs.append(pl.BlockSpec((E, B, D), lambda i: (0, 0, 0)))
    ops += [gate_final, agg_mat, expert_slab]

    return pl.pallas_call(
        _make_gate_kernel(n_layers),
        out_shape=(
            jax.ShapeDtypeStruct((H, B, D), jnp.float32),
            jax.ShapeDtypeStruct((H, 1, H), jnp.float32),
        ),
        grid_spec=pltpu.PrefetchScalarGridSpec(
            num_scalar_prefetch=0,
            grid=(H,),
            in_specs=in_specs,
            out_specs=(
                pl.BlockSpec((1, B, D), lambda i: (i, 0, 0)),
                pl.BlockSpec((1, 1, H), lambda i: (i, 0, 0)),
            ),
        ),
        compiler_params=pltpu.CompilerParams(dimension_semantics=("parallel",)),
    )(*ops)


# ---------------------------------------------------------------------------
# Parameters (stacked layouts so the kernels can index one expert / one head
# per grid step)
# ---------------------------------------------------------------------------
def init_stem_params(key, cfg):
    T = cfg["num_tasks"]
    S = cfg["num_specific_experts"]
    M = cfg["num_shared_experts"]
    E = T * S + M
    Din = cfg["input_dim"]
    std = cfg["init_std"]

    def stacked_mlp(key, n_stack, dims):
        ws, bs = [], []
        d = dims[0]
        for u in dims[1:]:
            key, k = jax.random.split(key)
            ws.append(std * jax.random.normal(k, (n_stack, d, u), jnp.float32))
            bs.append(jnp.zeros((n_stack, 1, u), jnp.float32))
            d = u
        return ws, bs, key

    ew, eb, key = stacked_mlp(key, E, [Din] + list(cfg["expert_hidden_units"]))
    gw, gb, key = stacked_mlp(key, T + 1, [Din] + list(cfg["gate_hidden_units"]))
    key, k = jax.random.split(key)
    gf = std * jax.random.normal(
        k, (T + 1, cfg["gate_hidden_units"][-1], E), jnp.float32)

    # expert -> which x it reads: specific experts of task i read x[i],
    # shared experts read x[-1] == x[T]
    idx_py = []
    for i in range(T):
        idx_py += [i] * S
    idx_py += [T] * M

    # aggregation matrix: column t sums task-t's specific experts,
    # column T sums the shared experts (applied to batch-mean softmax probs).
    agg_rows = []
    for i in range(T):
        agg_rows += [[1.0 if t == i else 0.0 for t in range(T + 1)]] * S
    agg_rows += [[1.0 if t == T else 0.0 for t in range(T + 1)]] * M

    return dict(
        expert_w=ew, expert_b=eb,
        gate_w=gw, gate_b=gb, gate_final=gf,
        expert_x_idx=jnp.asarray(idx_py, jnp.int32),
        expert_x_idx_py=idx_py,
        agg_mat=jnp.asarray(agg_rows, jnp.float32),
    )


# ---------------------------------------------------------------------------
# Forward passes
# ---------------------------------------------------------------------------
def stem_forward_pallas(params, x_list, cfg, return_gate=False):
    """x_list: list of length num_tasks+1, each [B, input_dim]."""
    T = cfg["num_tasks"]
    x_stack = jnp.stack(x_list, axis=0)                       # [T+1, B, Din]
    expert_slab = fused_experts(
        x_stack, params["expert_x_idx"], params["expert_w"], params["expert_b"])
    stem_out, gate_agg = fused_gates(
        x_stack, params["gate_w"], params["gate_b"],
        params["gate_final"], params["agg_mat"], expert_slab)
    outs = [stem_out[i] for i in range(T + 1)]
    if return_gate:
        # PyTorch module only records gates for the first num_tasks heads.
        gates = [gate_agg[i, 0] for i in range(T)]
        return outs, gates
    return outs


def _mlp_ref(x, ws, bs):
    h = x
    for w, b in zip(ws, bs):
        h = jnp.maximum(h @ w + b, 0.0)
    return h


def stem_forward_ref(params, x_list, cfg, return_gate=False):
    """Pure-JAX reference with identical math / parameter layout."""
    T = cfg["num_tasks"]
    S = cfg["num_specific_experts"]
    M = cfg["num_shared_experts"]
    E = T * S + M

    expert_outs = []
    for e in range(E):
        xe = x_list[params["expert_x_idx_py"][e]]
        ws = [W[e] for W in params["expert_w"]]
        bs = [b[e] for b in params["expert_b"]]
        expert_outs.append(_mlp_ref(xe, ws, bs))
    gate_input = jnp.stack(expert_outs, axis=1)               # [B, E, D]

    outs, gates = [], []
    for i in range(T + 1):
        ws = [W[i] for W in params["gate_w"]]
        bs = [b[i] for b in params["gate_b"]]
        gm = _mlp_ref(x_list[i] + x_list[-1], ws, bs)
        logits = gm @ params["gate_final"][i]
        p = jax.nn.softmax(logits, axis=-1)
        outs.append(jnp.sum(p[:, :, None] * gate_input, axis=1))
        if return_gate and i < T:
            spec = jnp.mean(p[:, : S * T], axis=0)
            task_gate = jnp.split(spec, T)
            sg = [jnp.sum(tg) for tg in task_gate]
            sh = jnp.sum(jnp.mean(p[:, -M:], axis=0))
            gates.append(jnp.stack(sg + [sh]).reshape(-1))
    if return_gate:
        return outs, gates
    return outs


# ---------------------------------------------------------------------------
if __name__ == "__main__":
    cfg = dict(
        num_shared_experts=2,
        num_specific_experts=2,
        num_tasks=2,
        input_dim=32,
        expert_hidden_units=[32, 16],
        gate_hidden_units=[32, 16],
        init_std=0.05,
    )
    B = 8

    key = jax.random.PRNGKey(0)
    key, pkey = jax.random.split(key)
    params = init_stem_params(pkey, cfg)

    x_list = []
    for _ in range(cfg["num_tasks"] + 1):
        key, k = jax.random.split(key)
        x_list.append(jax.random.normal(k, (B, cfg["input_dim"]), jnp.float32))

    outs, gates = stem_forward_pallas(params, x_list, cfg, return_gate=True)
    outs = [jax.block_until_ready(o) for o in outs]
    gates = [jax.block_until_ready(g) for g in gates]

    # pure-JAX reference check
    ref_outs, ref_gates = stem_forward_ref(params, x_list, cfg, return_gate=True)
    for o, r in zip(outs, ref_outs):
        assert o.shape == (B, cfg["expert_hidden_units"][-1])
        assert float(jnp.max(jnp.abs(o - r))) < 1e-5
    for g, r in zip(gates, ref_gates):
        assert g.shape == (cfg["num_tasks"] + 1,)
        assert float(jnp.max(jnp.abs(g - r))) < 1e-5

    print("KERNEL_OK")
</pallas_src>

<mosaic_0001>
module attributes {stable_mosaic.version = 11 : i64} {
  func.func @kernel(%arg0: i32, %arg1: memref<6xi32, #tpu.memory_space<smem>>, %arg2: memref<1x8x32xf32, #tpu.memory_space<vmem>>, %arg3: memref<1x32x32xf32, #tpu.memory_space<vmem>>, %arg4: memref<1x1x32xf32, #tpu.memory_space<vmem>>, %arg5: memref<1x32x16xf32, #tpu.memory_space<vmem>>, %arg6: memref<1x1x16xf32, #tpu.memory_space<vmem>>, %arg7: memref<1x8x16xf32, #tpu.memory_space<vmem>>) attributes {dimension_semantics = [#tpu.dimension_semantics<parallel>], iteration_bounds = array<i64: 6>, scalar_prefetch = 1 : i64, scratch_operands = 0 : i64, tpu.core_type = #tpu.core_type<tc>, window_params = [{transform_indices = @transform_0, window_bounds = array<i64: 1, 8, 32>}, {transform_indices = @transform_1, window_bounds = array<i64: 1, 32, 32>}, {transform_indices = @transform_2, window_bounds = array<i64: 1, 1, 32>}, {transform_indices = @transform_3, window_bounds = array<i64: 1, 32, 16>}, {transform_indices = @transform_4, window_bounds = array<i64: 1, 1, 16>}, {transform_indices = @transform_5, window_bounds = array<i64: 1, 8, 16>}]} {
    %c0 = arith.constant 0 : index
    %c0_0 = arith.constant 0 : index
    %c0_1 = arith.constant 0 : index
    %0 = vector.load %arg2[%c0, %c0_0, %c0_1] : memref<1x8x32xf32, #tpu.memory_space<vmem>>, vector<1x8x32xf32>
    %1 = vector.shape_cast %0 : vector<1x8x32xf32> to vector<8x32xf32>
    %c0_2 = arith.constant 0 : index
    %c0_3 = arith.constant 0 : index
    %c0_4 = arith.constant 0 : index
    %2 = vector.load %arg3[%c0_2, %c0_3, %c0_4] : memref<1x32x32xf32, #tpu.memory_space<vmem>>, vector<1x32x32xf32>
    %3 = vector.shape_cast %2 : vector<1x32x32xf32> to vector<32x32xf32>
    %c0_5 = arith.constant 0 : index
    %c0_6 = arith.constant 0 : index
    %c0_7 = arith.constant 0 : index
    %4 = vector.load %arg4[%c0_5, %c0_6, %c0_7] : memref<1x1x32xf32, #tpu.memory_space<vmem>>, vector<1x1x32xf32>
    %5 = vector.shape_cast %4 : vector<1x1x32xf32> to vector<1x32xf32>
    %cst = arith.constant dense<0.000000e+00> : vector<8x32xf32>
    %6 = tpu.matmul %1, %3, %cst {dimension_numbers = #tpu.dot_dimension_numbers<[1], [0], [0], [1], [0, 0, 1, 1], [], []>} : vector<8x32xf32>, vector<32x32xf32>, vector<8x32xf32> -> vector<8x32xf32>
    %7 = vector.broadcast %5 : vector<1x32xf32> to vector<8x32xf32>
    %8 = arith.addf %6, %7 : vector<8x32xf32>
    %cst_8 = arith.constant 0.000000e+00 : f32
    %9 = vector.broadcast %cst_8 : f32 to vector<8x32xf32>
    %10 = arith.maximumf %8, %9 : vector<8x32xf32>
    %c0_9 = arith.constant 0 : index
    %c0_10 = arith.constant 0 : index
    %c0_11 = arith.constant 0 : index
    %11 = vector.load %arg5[%c0_9, %c0_10, %c0_11] : memref<1x32x16xf32, #tpu.memory_space<vmem>>, vector<1x32x16xf32>
    %12 = vector.shape_cast %11 : vector<1x32x16xf32> to vector<32x16xf32>
    %c0_12 = arith.constant 0 : index
    %c0_13 = arith.constant 0 : index
    %c0_14 = arith.constant 0 : index
    %13 = vector.load %arg6[%c0_12, %c0_13, %c0_14] : memref<1x1x16xf32, #tpu.memory_space<vmem>>, vector<1x1x16xf32>
    %14 = vector.shape_cast %13 : vector<1x1x16xf32> to vector<1x16xf32>
    %cst_15 = arith.constant dense<0.000000e+00> : vector<8x16xf32>
    %15 = tpu.matmul %10, %12, %cst_15 {dimension_numbers = #tpu.dot_dimension_numbers<[1], [0], [0], [1], [0, 0, 1, 1], [], []>} : vector<8x32xf32>, vector<32x16xf32>, vector<8x16xf32> -> vector<8x16xf32>
    %16 = vector.broadcast %14 : vector<1x16xf32> to vector<8x16xf32>
    %17 = arith.addf %15, %16 : vector<8x16xf32>
    %cst_16 = arith.constant 0.000000e+00 : f32
    %18 = vector.broadcast %cst_16 : f32 to vector<8x16xf32>
    %19 = arith.maximumf %17, %18 : vector<8x16xf32>
    %c0_17 = arith.constant 0 : index
    %c0_18 = arith.constant 0 : index
    %c0_19 = arith.constant 0 : index
    %20 = vector.load %arg7[%c0_17, %c0_18, %c0_19] : memref<1x8x16xf32, #tpu.memory_space<vmem>>, vector<1x8x16xf32>
    %21 = vector.shape_cast %20 : vector<1x8x16xf32> to vector<8x16xf32>
    %22 = vector.shape_cast %19 : vector<8x16xf32> to vector<1x8x16xf32>
    tpu.vector_store %arg7[%c0_17, %c0_18, %c0_19], %22 {strides = array<i32>} : memref<1x8x16xf32, #tpu.memory_space<vmem>>, vector<1x8x16xf32>,
    return
  }
  func.func @transform_0(%arg0: i32, %arg1: memref<6xi32, #tpu.memory_space<smem>>) -> (i32, i32, i32) {
    %0 = arith.index_cast %arg0 : i32 to index
    %1 = memref.load %arg1[%0] : memref<6xi32, #tpu.memory_space<smem>>
    %c0_i32 = arith.constant 0 : i32
    %c0_i32_0 = arith.constant 0 : i32
    %c0_i32_1 = arith.constant 0 : i32
    return %1, %c0_i32, %c0_i32_0 : i32, i32, i32
  }
  func.func @transform_1(%arg0: i32, %arg1: memref<6xi32, #tpu.memory_space<smem>>) -> (i32, i32, i32) {
    %c0_i32 = arith.constant 0 : i32
    %c0_i32_0 = arith.constant 0 : i32
    %c0_i32_1 = arith.constant 0 : i32
    return %arg0, %c0_i32, %c0_i32_0 : i32, i32, i32
  }
  func.func @transform_2(%arg0: i32, %arg1: memref<6xi32, #tpu.memory_space<smem>>) -> (i32, i32, i32) {
    %c0_i32 = arith.constant 0 : i32
    %c0_i32_0 = arith.constant 0 : i32
    %c0_i32_1 = arith.constant 0 : i32
    return %arg0, %c0_i32, %c0_i32_0 : i32, i32, i32
  }
  func.func @transform_3(%arg0: i32, %arg1: memref<6xi32, #tpu.memory_space<smem>>) -> (i32, i32, i32) {
    %c0_i32 = arith.constant 0 : i32
    %c0_i32_0 = arith.constant 0 : i32
    %c0_i32_1 = arith.constant 0 : i32
    return %arg0, %c0_i32, %c0_i32_0 : i32, i32, i32
  }
  func.func @transform_4(%arg0: i32, %arg1: memref<6xi32, #tpu.memory_space<smem>>) -> (i32, i32, i32) {
    %c0_i32 = arith.constant 0 : i32
    %c0_i32_0 = arith.constant 0 : i32
    %c0_i32_1 = arith.constant 0 : i32
    return %arg0, %c0_i32, %c0_i32_0 : i32, i32, i32
  }
  func.func @transform_5(%arg0: i32, %arg1: memref<6xi32, #tpu.memory_space<smem>>) -> (i32, i32, i32) {
    %c0_i32 = arith.constant 0 : i32
    %c0_i32_0 = arith.constant 0 : i32
    %c0_i32_1 = arith.constant 0 : i32
    return %arg0, %c0_i32, %c0_i32_0 : i32, i32, i32
  }
}

</mosaic_0001>

<llo_original>
// kernel: tpu_custom_call.1
$region0: #{tpu_custom_call.1}
  #allocation0 [shape = 'u32[]', space=smem, size = 0x4, offset = 0x4, fixed_abs, tag = 'smem constant byte address 0x4 - core index']
  #allocation1 [shape = 'u32[144,128]{1,0:T(1,128)}', space=vmem, size = 0x12000, scoped, tag = 'internal scratch']
  #allocation2 [shape = 's32[1]{0}', space=sflag, size = 0x4, scoped, tag = 'scoped memory for tpu_custom_call.1']
  #allocation3 [shape = 'u8[512]{0}', space=smem, size = 0x200, scoped, tag = 'prefetched SMEM operand 0']
  %s0 = inlined_call_operand.vmem [shape: s32[6], index: 0, kind: input, shape index: {}]
  %s1 = inlined_call_operand.vmem [shape: f32[3,8,32], index: 1, kind: input, shape index: {}]
  %s2 = inlined_call_operand.vmem [shape: f32[6,32,32], index: 2, kind: input, shape index: {}]
  %s3 = inlined_call_operand.vmem [shape: f32[6,1,32], index: 3, kind: input, shape index: {}]
  %s4 = inlined_call_operand.vmem [shape: f32[6,32,16], index: 4, kind: input, shape index: {}]
  %s5 = inlined_call_operand.vmem [shape: f32[6,1,16], index: 5, kind: input, shape index: {}]
  %s6 = inlined_call_operand.hbm [shape: f32[6,8,16], index: 6, kind: output, shape index: {}]
  %s7 = sld [smem:[#allocation0]]
  $region53: #{tpu_custom_call.1} parent=0
    _
  %s9 = ssub.s32 1, %s7
  %s10 = scalar_select 0, %s9, %s7
  %s11 = sshll.u32 %s0, 4
  %s12 = int_to_ptr.vmem [resolvable:$true] %s11
  %14 = dma.vmem_to_smem %s12, 16, [#allocation3], [#allocation2]
  %15 = dma.done [#allocation2], 16
  %16 = sfence
  $region1: #{tpu_custom_call.1} parent=0
    #allocation4 [shape = 'u8[8192]{0}', space=vmem, size = 0x2000, scoped, tag = 'output window, operand 0']
    #allocation5 [shape = 's32[2]{0}', space=sflag, size = 0x8, scoped, tag = 'scoped memory for tpu_custom_call.1']
    %17 = vsyncpa [#allocation5], 0
    %s18 = scalar_lea.sflag [#allocation5], 1
    %19 = vsyncpa %s18, 0
    loop: start=0, step=1, limit=8
    $region2: #{tpu_custom_call.1} parent=1 // loop_pre_header
      _
    $region3: #{tpu_custom_call.1} parent=1 // loop_header
      %s21 = sphi 0, %s25
      %p22 = scmp.ge.s32.totalorder %s21, 8
      %s33 = sphi 0, %s35
      %s36 = sphi 0, %s33
      %s37 = sphi 0, %s36
      %s53 = sphi 0, %s37
      %s59 = sphi 0, %s61
      %s62 = sphi 0, %s59
      %s63 = sphi 0, %s62
      %s79 = sphi 0, %s63
      %s85 = sphi 0, %s87
      %s88 = sphi 0, %s85
      %s89 = sphi 0, %s88
      %s105 = sphi 0, %s89
      %s111 = sphi 0, %s113
      %s114 = sphi 0, %s111
      %s115 = sphi 0, %s114
      %s131 = sphi 0, %s115
      %s137 = sphi 0, %s139
      %s140 = sphi 0, %s137
      %s141 = sphi 0, %s140
      %s157 = sphi 0, %s141
      %s163 = sphi 0, %s165
      %s166 = sphi 0, %s163
      %s167 = sphi 0, %s166
      %s183 = sphi 0, %s167
    $region4: #{tpu_custom_call.1} parent=1 // loop_header_branch
      %24 = sbr.rel (%p22) target = $region8
    $region5: #{tpu_custom_call.1} parent=1 // loop_body
      %s26 = ssub.s32 %s21, 1
      %s27 = ssub.s32 %s21, 2
      %s28 = sadd.s32 %s21, 1
      %s29 = sld [smem:[#allocation3 + %s21]]
      %s30 = sld [smem:[#allocation3 + %s28]]
      %s31 = ssub.s32 %s29, %s30
      %p32 = scmp.eq.s32.totalorder %s31, 0
      %s34 = sadd.s32 %s33, 1
      %s35 = scalar_select %p32, %s33, %s34
      %p38 = pneg %p32
      %p39 = scmp.eq.s32.totalorder %s21, 5
      %p40 = por %p38, %p39
      %p41 = scmp.ne.s32.totalorder %s33, %s36
      %p42 = scmp.eq.s32.totalorder %s21, 0
      %p43 = por %p41, %p42
      %p44 = scmp.ne.s32.totalorder %s33, %s36
      %p45 = scmp.eq.s32.totalorder %s26, 5
      %p46 = por %p44, %p45
      %p47 = scmp.ne.s32.totalorder %s36, %s37
      %p48 = scmp.eq.s32.totalorder %s26, 0
      %p49 = por %p47, %p48
      %p50 = scmp.ne.s32.totalorder %s36, %s37
      %p51 = scmp.eq.s32.totalorder %s27, 5
      %p52 = por %p50, %p51
      %p54 = scmp.ne.s32.totalorder %s37, %s53
      %p55 = scmp.eq.s32.totalorder %s27, 0
      %p56 = por %p54, %p55
      %s57 = ssub.s32 %s21, %s28
      %p58 = scmp.eq.s32.totalorder %s57, 0
      %s60 = sadd.s32 %s59, 1
      %s61 = scalar_select %p58, %s59, %s60
      %p64 = pneg %p58
      %p65 = scmp.eq.s32.totalorder %s21, 5
      %p66 = por %p64, %p65
      %p67 = scmp.ne.s32.totalorder %s59, %s62
      %p68 = scmp.eq.s32.totalorder %s21, 0
      %p69 = por %p67, %p68
      %p70 = scmp.ne.s32.totalorder %s59, %s62
      %p71 = scmp.eq.s32.totalorder %s26, 5
      %p72 = por %p70, %p71
      %p73 = scmp.ne.s32.totalorder %s62, %s63
      %p74 = scmp.eq.s32.totalorder %s26, 0
      %p75 = por %p73, %p74
      %p76 = scmp.ne.s32.totalorder %s62, %s63
      %p77 = scmp.eq.s32.totalorder %s27, 5
      %p78 = por %p76, %p77
      %p80 = scmp.ne.s32.totalorder %s63, %s79
      %p81 = scmp.eq.s32.totalorder %s27, 0
      %p82 = por %p80, %p81
      %s83 = ssub.s32 %s21, %s28
      %p84 = scmp.eq.s32.totalorder %s83, 0
      %s86 = sadd.s32 %s85, 1
      %s87 = scalar_select %p84, %s85, %s86
      %p90 = pneg %p84
      %p91 = scmp.eq.s32.totalorder %s21, 5
      %p92 = por %p90, %p91
      %p93 = scmp.ne.s32.totalorder %s85, %s88
      %p94 = scmp.eq.s32.totalorder %s21, 0
      %p95 = por %p93, %p94
      %p96 = scmp.ne.s32.totalorder %s85, %s88
      %p97 = scmp.eq.s32.totalorder %s26, 5
      %p98 = por %p96, %p97
      %p99 = scmp.ne.s32.totalorder %s88, %s89
      %p100 = scmp.eq.s32.totalorder %s26, 0
      %p101 = por %p99, %p100
      %p102 = scmp.ne.s32.totalorder %s88, %s89
      %p103 = scmp.eq.s32.totalorder %s27, 5
      %p104 = por %p102, %p103
      %p106 = scmp.ne.s32.totalorder %s89, %s105
      %p107 = scmp.eq.s32.totalorder %s27, 0
      %p108 = por %p106, %p107
      %s109 = ssub.s32 %s21, %s28
      %p110 = scmp.eq.s32.totalorder %s109, 0
      %s112 = sadd.s32 %s111, 1
      %s113 = scalar_select %p110, %s111, %s112
      %p116 = pneg %p110
      %p117 = scmp.eq.s32.totalorder %s21, 5
      %p118 = por %p116, %p117
      %p119 = scmp.ne.s32.totalorder %s111, %s114
      %p120 = scmp.eq.s32.totalorder %s21, 0
      %p121 = por %p119, %p120
      %p122 = scmp.ne.s32.totalorder %s111, %s114
      %p123 = scmp.eq.s32.totalorder %s26, 5
      %p124 = por %p122, %p123
      %p125 = scmp.ne.s32.totalorder %s114, %s115
      %p126 = scmp.eq.s32.totalorder %s26, 0
      %p127 = por %p125, %p126
      %p128 = scmp.ne.s32.totalorder %s114, %s115
      %p129 = scmp.eq.s32.totalorder %s27, 5
      %p130 = por %p128, %p129
      %p132 = scmp.ne.s32.totalorder %s115, %s131
      %p133 = scmp.eq.s32.totalorder %s27, 0
      %p134 = por %p132, %p133
      %s135 = ssub.s32 %s21, %s28
      %p136 = scmp.eq.s32.totalorder %s135, 0
      %s138 = sadd.s32 %s137, 1
      %s139 = scalar_select %p136, %s137, %s138
      %p142 = pneg %p136
      %p143 = scmp.eq.s32.totalorder %s21, 5
      %p144 = por %p142, %p143
      %p145 = scmp.ne.s32.totalorder %s137, %s140
      %p146 = scmp.eq.s32.totalorder %s21, 0
      %p147 = por %p145, %p146
      %p148 = scmp.ne.s32.totalorder %s137, %s140
      %p149 = scmp.eq.s32.totalorder %s26, 5
      %p150 = por %p148, %p149
      %p151 = scmp.ne.s32.totalorder %s140, %s141
      %p152 = scmp.eq.s32.totalorder %s26, 0
      %p153 = por %p151, %p152
      %p154 = scmp.ne.s32.totalorder %s140, %s141
      %p155 = scmp.eq.s32.totalorder %s27, 5
      %p156 = por %p154, %p155
      %p158 = scmp.ne.s32.totalorder %s141, %s157
      %p159 = scmp.eq.s32.totalorder %s27, 0
      %p160 = por %p158, %p159
      %s161 = ssub.s32 %s21, %s28
      %p162 = scmp.eq.s32.totalorder %s161, 0
      %s164 = sadd.s32 %s163, 1
      %s165 = scalar_select %p162, %s163, %s164
      %p168 = pneg %p162
      %p169 = scmp.eq.s32.totalorder %s21, 5
      %p170 = por %p168, %p169
      %p171 = scmp.ne.s32.totalorder %s163, %s166
      %p172 = scmp.eq.s32.totalorder %s21, 0
      %p173 = por %p171, %p172
      %p174 = scmp.ne.s32.totalorder %s163, %s166
      %p175 = scmp.eq.s32.totalorder %s26, 5
      %p176 = por %p174, %p175
      %p177 = scmp.ne.s32.totalorder %s166, %s167
      %p178 = scmp.eq.s32.totalorder %s26, 0
      %p179 = por %p177, %p178
      %p180 = scmp.ne.s32.totalorder %s166, %s167
      %p181 = scmp.eq.s32.totalorder %s27, 5
      %p182 = por %p180, %p181
      %p184 = scmp.ne.s32.totalorder %s167, %s183
      %p185 = scmp.eq.s32.totalorder %s27, 0
      %p186 = por %p184, %p185
      %p187 = scmp.le.s32.totalorder 1, %s21
      %p188 = scmp.lt.s32.totalorder %s21, 7
      %p189 = pnand %p187, %p188
      %p190 = pneg %p189
      // Predicated region
      $region9: #{tpu_custom_call.1} parent=5 // pred_check
        _
      $region10: #{tpu_custom_call.1} parent=5 // pred_check_branch
        %192 = sbr.rel (%p189) target = $region12
      $region11: #{tpu_custom_call.1} parent=5 // pred_region
        %s193 = ssub.s32 %s21, 1
      $region12: #{tpu_custom_call.1} parent=5 // pred_fallthru
        _
      %p194 = scmp.lt.s32.totalorder %s21, 6
      // Predicated region
      $region13: #{tpu_custom_call.1} parent=5 // pred_check
        %p195 = pneg %p194
      $region14: #{tpu_custom_call.1} parent=5 // pred_check_branch
        %197 = sbr.rel (%p195) target = $region16
      $region15: #{tpu_custom_call.1} parent=5 // pred_region
        // Predicated region
        $region17: #{tpu_custom_call.1} parent=15 // pred_check
          %p198 = pneg %p43
        $region18: #{tpu_custom_call.1} parent=15 // pred_check_branch
          %200 = sbr.rel (%p198) target = $region20
        $region19: #{tpu_custom_call.1} parent=15 // pred_region
          %s201 = sld [smem:[#allocation3 + %s21]]
          %p202 = scmp.lt.s32.totalorder %s201, 2
          %s203 = scalar_select %p202, %s201, 2
          %s204 = smul.addr %s203, 8
          %s205 = scalar_lea.vmem %s1, %s204
          %s206 = sld [smem:[#allocation3 + %s21]]
        $region20: #{tpu_custom_call.1} parent=15 // pred_fallthru
          _
        // Predicated region
        $region21: #{tpu_custom_call.1} parent=15 // pred_check
          %p207 = pneg %p69
        $region22: #{tpu_custom_call.1} parent=15 // pred_check_branch
          %209 = sbr.rel (%p207) target = $region24
        $region23: #{tpu_custom_call.1} parent=15 // pred_region
          %p210 = scmp.lt.s32.totalorder %s21, 5
          %s211 = scalar_select %p210, %s21, 5
          %s212 = smul.addr %s211, 4
          %s213 = smul.addr %s212, 8
          %s214 = scalar_lea.vmem %s2, %s213
        $region24: #{tpu_custom_call.1} parent=15 // pred_fallthru
          _
        // Predicated region
        $region25: #{tpu_custom_call.1} parent=15 // pred_check
          %p215 = pneg %p95
        $region26: #{tpu_custom_call.1} parent=15 // pred_check_branch
          %217 = sbr.rel (%p215) target = $region28
        $region27: #{tpu_custom_call.1} parent=15 // pred_region
          %p218 = scmp.lt.s32.totalorder %s21, 5
          %s219 = scalar_select %p218, %s21, 5
          %s220 = scalar_lea.vmem %s3, %s219
        $region28: #{tpu_custom_call.1} parent=15 // pred_fallthru
          _
        // Predicated region
        $region29: #{tpu_custom_call.1} parent=15 // pred_check
          %p221 = pneg %p121
        $region30: #{tpu_custom_call.1} parent=15 // pred_check_branch
          %223 = sbr.rel (%p221) target = $region32
        $region31: #{tpu_custom_call.1} parent=15 // pred_region
          %p224 = scmp.lt.s32.totalorder %s21, 5
          %s225 = scalar_select %p224, %s21, 5
          %s226 = smul.addr %s225, 4
          %s227 = smul.addr %s226, 8
          %s228 = scalar_lea.vmem %s4, %s227
        $region32: #{tpu_custom_call.1} parent=15 // pred_fallthru
          _
        // Predicated region
        $region33: #{tpu_custom_call.1} parent=15 // pred_check
          %p229 = pneg %p147
        $region34: #{tpu_custom_call.1} parent=15 // pred_check_branch
          %231 = sbr.rel (%p229) target = $region36
        $region35: #{tpu_custom_call.1} parent=15 // pred_region
          %p232 = scmp.lt.s32.totalorder %s21, 5
          %s233 = scalar_select %p232, %s21, 5
          %s234 = scalar_lea.vmem %s5, %s233
        $region36: #{tpu_custom_call.1} parent=15 // pred_fallthru
          _
      $region16: #{tpu_custom_call.1} parent=5 // pred_fallthru
        _
      %p235 = scmp.le.s32.totalorder 1, %s21
      %p236 = scmp.lt.s32.totalorder %s21, 7
      %p237 = pnand %p235, %p236
      %p238 = pneg %p237
      // Predicated region
      $region37: #{tpu_custom_call.1} parent=5 // pred_check
        _
      $region38: #{tpu_custom_call.1} parent=5 // pred_check_branch
        %240 = sbr.rel (%p237) target = $region40
      $region39: #{tpu_custom_call.1} parent=5 // pred_region
        %s241 = ssub.s32 %s21, 1
        %s242 = sld [smem:[#allocation3 + %s26]]
        %p243 = scmp.lt.s32.totalorder %s242, 2
        %s244 = scalar_select %p243, %s242, 2
        %s245 = smul.addr %s244, 8
        %s246 = scalar_lea.vmem %s1, %s245
        %p247 = pneg %p49
        %p248 = pneg %p46
        %p249 = scmp.lt.s32.totalorder %s26, 5
        %s250 = scalar_select %p249, %s26, 5
        %s251 = smul.addr %s250, 4
        %s252 = smul.addr %s251, 8
        %s253 = scalar_lea.vmem %s2, %s252
        %p254 = pneg %p75
        %p255 = pneg %p72
        %p256 = scmp.lt.s32.totalorder %s26, 5
        %s257 = scalar_select %p256, %s26, 5
        %s258 = scalar_lea.vmem %s3, %s257
        %p259 = pneg %p101
        %p260 = pneg %p98
        %p261 = scmp.lt.s32.totalorder %s26, 5
        %s262 = scalar_select %p261, %s26, 5
        %s263 = smul.addr %s262, 4
        %s264 = smul.addr %s263, 8
        %s265 = scalar_lea.vmem %s4, %s264
        %p266 = pneg %p127
        %p267 = pneg %p124
        %p268 = scmp.lt.s32.totalorder %s26, 5
        %s269 = scalar_select %p268, %s26, 5
        %s270 = scalar_lea.vmem %s5, %s269
        %p271 = pneg %p153
        %p272 = pneg %p150
        %p273 = pneg %p179
        %p274 = pneg %p176
        %s275 = sand.u32 %s166, 1
        %s276 = scalar_lea.sflag [#allocation5], %s275
        %s277 = sand.u32 %s166, 1
        %s278 = smul.addr %s277, 8
        %s279 = scalar_lea.vmem [#allocation4], %s278
        %s280 = sld [smem:[#allocation3 + %s26]]
        %p281 = scmp.lt.s32.totalorder %s280, 2
        %s282 = scalar_select %p281, %s280, 2
        %s283 = smul.addr %s282, 8
        %s284 = scalar_lea.vmem %s1, %s283
        %s285 = sld [smem:[#allocation3 + %s26]]
        %p286 = scmp.lt.s32.totalorder %s26, 5
        %s287 = scalar_select %p286, %s26, 5
        %s288 = smul.addr %s287, 4
        %s289 = smul.addr %s288, 8
        %s290 = scalar_lea.vmem %s2, %s289
        %p291 = scmp.lt.s32.totalorder %s26, 5
        %s292 = scalar_select %p291, %s26, 5
        %s293 = scalar_lea.vmem %s3, %s292
        %p294 = scmp.lt.s32.totalorder %s26, 5
        %s295 = scalar_select %p294, %s26, 5
        %s296 = smul.addr %s295, 4
        %s297 = smul.addr %s296, 8
        %s298 = scalar_lea.vmem %s4, %s297
        %p299 = scmp.lt.s32.totalorder %s26, 5
        %s300 = scalar_select %p299, %s26, 5
        %s301 = scalar_lea.vmem %s5, %s300
        %v302 = vld [vmem:[%s284] sm:$0xff]
        %v303 = vld [vmem:[%s290] sm:$0xff]
        %v304 = vld [vmem:[%s290 + $0x8] sm:$0xff]
        %v305 = vld [vmem:[%s290 + $0x10] sm:$0xff]
        %v306 = vld [vmem:[%s290 + $0x18] sm:$0xff]
        %v307 = vld [vmem:[%s293] sm:$0x1]
        %v309 = vlaneseq
        %v310 = vshrl.u32 %v309, 7
        %v311 = vsub.s32 0, %v310
        %v312 = vrot.slane %v307, %v311
        %vm314 = vcmask 261120
        %v316 = vsel %vm314, %v302, 0
        %318 = vmatprep.subr.mxu0 0.0
        %319 = vmatpush1.msra.mxu0 0.0
        %320 = vmatprep.subr.mxu0 0.0
        %321 = vmatpush1.msra.mxu0 0.0
        %322 = vmatprep.subr.mxu0 0.0
        %323 = vmatpush1.msra.mxu0 0.0
        %324 = vmatprep.subr.mxu0 0.0
        %325 = vmatpush1.msra.mxu0 0.0
        %326 = vmatprep.subr.mxu0 0.0
        %327 = vmatpush1.msra.mxu0 0.0
        %328 = vmatprep.subr.mxu0 0.0
        %329 = vmatpush1.msra.mxu0 0.0
        %330 = vmatprep.subr.mxu0 0.0
        %331 = vmatpush1.msra.mxu0 0.0
        %332 = vmatprep.subr.mxu0 0.0
        %333 = vmatpush1.msra.mxu0 0.0
        %334 = vmatprep.subr.mxu0 0.0
        %335 = vmatpush1.msra.mxu0 0.0
        %336 = vmatprep.subr.mxu0 0.0
        %337 = vmatpush1.msra.mxu0 0.0
        %338 = vmatprep.subr.mxu0 0.0
        %339 = vmatpush1.msra.mxu0 0.0
        %340 = vmatprep.subr.mxu0 0.0
        %341 = vmatpush1.msra.mxu0 0.0
        %342 = vmatprep.subr.mxu0 0.0
        %343 = vmatpush1.msra.mxu0 %v306
        %344 = vmatprep.subr.mxu0 0.0
        %345 = vmatpush1.msra.mxu0 %v305
        %346 = vmatprep.subr.mxu0 0.0
        %347 = vmatpush1.msra.mxu0 %v304
        %348 = vmatprep.subr.mxu0 0.0
        %349 = vmatpush1.msra.mxu0 %v303
        %350 = vmatprep.subr.mxu0 0.0
        %351 = vmatpush2.msra.mxu0 0.0
        %352 = vmatprep.subr.mxu0 0.0
        %353 = vmatpush2.msra.mxu0 0.0
        %354 = vmatprep.subr.mxu0 0.0
        %355 = vmatpush2.msra.mxu0 0.0
        %356 = vmatprep.subr.mxu0 0.0
        %357 = vmatpush2.msra.mxu0 0.0
        %358 = vmatprep.subr.mxu0 0.0
        %359 = vmatpush2.msra.mxu0 0.0
        %360 = vmatprep.subr.mxu0 0.0
        %361 = vmatpush2.msra.mxu0 0.0
        %362 = vmatprep.subr.mxu0 0.0
        %363 = vmatpush2.msra.mxu0 0.0
        %364 = vmatprep.subr.mxu0 0.0
        %365 = vmatpush2.msra.mxu0 0.0
        %366 = vmatprep.subr.mxu0 0.0
        %367 = vmatpush2.msra.mxu0 0.0
        %368 = vmatprep.subr.mxu0 0.0
        %369 = vmatpush2.msra.mxu0 0.0
        %370 = vmatprep.subr.mxu0 0.0
        %371 = vmatpush2.msra.mxu0 0.0
        %372 = vmatprep.subr.mxu0 0.0
        %373 = vmatpush2.msra.mxu0 0.0
        %374 = vmatprep.subr.mxu0 0.0
        %375 = vmatpush2.msra.mxu0 0.0
        %376 = vmatprep.subr.mxu0 0.0
        %377 = vmatpush2.msra.mxu0 0.0
        %378 = vmatprep.subr.mxu0 0.0
        %379 = vmatpush2.msra.mxu0 0.0
        %380 = vmatprep.subr.mxu0 0.0
        %381 = vmatpush2.msra.mxu0 0.0
        %382 = vmatprep.mubr.f32.mxu0 0.0
        %383 = vmatmul.mubr.f32.gmra.mxu0 %v316
        %v384 = vpop.f32.mrf.mxu0
        %v385 = vadd.f32 %v312, %v384
        %v386 = vpop.f32.mrf.mxu0
        %387 = vdwg.mxu0
        %v388 = vmax.f32 %v385, 0.0
        %v389 = vld [vmem:[%s298] sm:$0xff]
        %v390 = vld [vmem:[%s298 + $0x8] sm:$0xff]
        %v391 = vld [vmem:[%s298 + $0x10] sm:$0xff]
        %v392 = vld [vmem:[%s298 + $0x18] sm:$0xff]
        %v393 = vld [vmem:[%s301] sm:$0x1]
        %v395 = vlaneseq
        %v396 = vshrl.u32 %v395, 7
        %v397 = vsub.s32 0, %v396
        %v398 = vrot.slane %v393, %v397
        %v401 = vsel %vm314, %v388, 0
        %403 = vmatprep.subr.mxu0 0.0
        %404 = vmatpush1.msra.mxu0 0.0
        %405 = vmatprep.subr.mxu0 0.0
        %406 = vmatpush1.msra.mxu0 0.0
        %407 = vmatprep.subr.mxu0 0.0
        %408 = vmatpush1.msra.mxu0 0.0
        %409 = vmatprep.subr.mxu0 0.0
        %410 = vmatpush1.msra.mxu0 0.0
        %411 = vmatprep.subr.mxu0 0.0
        %412 = vmatpush1.msra.mxu0 0.0
        %413 = vmatprep.subr.mxu0 0.0
        %414 = vmatpush1.msra.mxu0 0.0
        %415 = vmatprep.subr.mxu0 0.0
        %416 = vmatpush1.msra.mxu0 0.0
        %417 = vmatprep.subr.mxu0 0.0
        %418 = vmatpush1.msra.mxu0 0.0
        %419 = vmatprep.subr.mxu0 0.0
        %420 = vmatpush1.msra.mxu0 0.0
        %421 = vmatprep.subr.mxu0 0.0
        %422 = vmatpush1.msra.mxu0 0.0
        %423 = vmatprep.subr.mxu0 0.0
        %424 = vmatpush1.msra.mxu0 0.0
        %425 = vmatprep.subr.mxu0 0.0
        %426 = vmatpush1.msra.mxu0 0.0
        %427 = vmatprep.subr.mxu0 0.0
        %428 = vmatpush1.msra.mxu0 %v392
        %429 = vmatprep.subr.mxu0 0.0
        %430 = vmatpush1.msra.mxu0 %v391
        %431 = vmatprep.subr.mxu0 0.0
        %432 = vmatpush1.msra.mxu0 %v390
        %433 = vmatprep.subr.mxu0 0.0
        %434 = vmatpush1.msra.mxu0 %v389
        %435 = vmatprep.subr.mxu0 0.0
        %436 = vmatpush2.msra.mxu0 0.0
        %437 = vmatprep.subr.mxu0 0.0
        %438 = vmatpush2.msra.mxu0 0.0
        %439 = vmatprep.subr.mxu0 0.0
        %440 = vmatpush2.msra.mxu0 0.0
        %441 = vmatprep.subr.mxu0 0.0
        %442 = vmatpush2.msra.mxu0 0.0
        %443 = vmatprep.subr.mxu0 0.0
        %444 = vmatpush2.msra.mxu0 0.0
        %445 = vmatprep.subr.mxu0 0.0
        %446 = vmatpush2.msra.mxu0 0.0
        %447 = vmatprep.subr.mxu0 0.0
        %448 = vmatpush2.msra.mxu0 0.0
        %449 = vmatprep.subr.mxu0 0.0
        %450 = vmatpush2.msra.mxu0 0.0
        %451 = vmatprep.subr.mxu0 0.0
        %452 = vmatpush2.msra.mxu0 0.0
        %453 = vmatprep.subr.mxu0 0.0
        %454 = vmatpush2.msra.mxu0 0.0
        %455 = vmatprep.subr.mxu0 0.0
        %456 = vmatpush2.msra.mxu0 0.0
        %457 = vmatprep.subr.mxu0 0.0
        %458 = vmatpush2.msra.mxu0 0.0
        %459 = vmatprep.subr.mxu0 0.0
        %460 = vmatpush2.msra.mxu0 0.0
        %461 = vmatprep.subr.mxu0 0.0
        %462 = vmatpush2.msra.mxu0 0.0
        %463 = vmatprep.subr.mxu0 0.0
        %464 = vmatpush2.msra.mxu0 0.0
        %465 = vmatprep.subr.mxu0 0.0
        %466 = vmatpush2.msra.mxu0 0.0
        %467 = vmatprep.mubr.f32.mxu0 0.0
        %468 = vmatmul.mubr.f32.gmra.mxu0 %v401
        %v469 = vpop.f32.mrf.mxu0
        %v470 = vadd.f32 %v398, %v469
        %v471 = vpop.f32.mrf.mxu0
        %472 = vdwg.mxu0
        %v473 = vmax.f32 %v470, 0.0
        %vm474 = vcmask 130048
        %475 = vst.msk [vmem:[%s279] sm:$0xff] %vm474, %v473
        %s476 = sand.u32 %s166, 1
        %s477 = scalar_lea.sflag [#allocation5], %s476
        %s478 = sand.u32 %s166, 1
        %s479 = smul.addr %s478, 8
        %s480 = scalar_lea.vmem [#allocation4], %s479
        // Predicated region
        $region41: #{tpu_custom_call.1} parent=39 // pred_check
          %p481 = pneg %p176
        $region42: #{tpu_custom_call.1} parent=39 // pred_check_branch
          %483 = sbr.rel (%p481) target = $region44
        $region43: #{tpu_custom_call.1} parent=39 // pred_region
          %s485 = ssub.s32 128, 128
          %486 = vsyncadd %s477, %s485
          %s487 = smul.addr %s26, 128
          %s488 = scalar_lea.hbm %s6, %s487
          %s490 = sshll.u32 %s480, 4
          %s491 = int_to_ptr.vmem [resolvable:$true] %s490
          %493 = dma.vmem_to_hbm [thread:$0]  %s491, 128, %s488, %s477
        $region44: #{tpu_custom_call.1} parent=39 // pred_fallthru
          _
      $region40: #{tpu_custom_call.1} parent=5 // pred_fallthru
        _
      %p494 = scmp.le.s32.totalorder 2, %s21
      // Predicated region
      $region45: #{tpu_custom_call.1} parent=5 // pred_check
        %p495 = pneg %p494
      $region46: #{tpu_custom_call.1} parent=5 // pred_check_branch
        %497 = sbr.rel (%p495) target = $region48
      $region47: #{tpu_custom_call.1} parent=5 // pred_region
        %s498 = ssub.s32 %s21, 2
        // Predicated region
        $region49: #{tpu_custom_call.1} parent=47 // pred_check
          %p499 = pneg %p182
        $region50: #{tpu_custom_call.1} parent=47 // pred_check_branch
          %501 = sbr.rel (%p499) target = $region52
        $region51: #{tpu_custom_call.1} parent=47 // pred_region
          %s502 = sand.u32 %s167, 1
          %s503 = scalar_lea.sflag [#allocation5], %s502
          %s504 = sand.u32 %s167, 1
          %s505 = smul.addr %s504, 8
          %s506 = scalar_lea.vmem [#allocation4], %s505
          %507 = dma.done %s503, 128
        $region52: #{tpu_custom_call.1} parent=47 // pred_fallthru
          _
      $region48: #{tpu_custom_call.1} parent=5 // pred_fallthru
        _
    $region6: #{tpu_custom_call.1} parent=1 // loop_footer
      %s25 = sadd.s32 1, %s21
    $region7: #{tpu_custom_call.1} parent=1 // loop_footer_branch
      %20 = sbr.rel target = $region3
    $region8: #{tpu_custom_call.1} parent=1 // loop_exit
      _
    %508 = vsyncpa [#allocation5], 1
    %s509 = scalar_lea.sflag [#allocation5], 1
    %510 = vsyncpa %s509, 1

</llo_original>
